<compile_context>
chip_gen: v6e
topology: v6e:2x2x1
jax: 0.10.0
libtpu: 0.0.40
codegen_flags: <defaults>
</compile_context>

<pallas_src>
import functools

import jax
import jax.numpy as jnp
from jax.experimental import pallas as pl
from jax.experimental.pallas import tpu as pltpu


_LANE_WIDTH = 512                       # lane-dense: multiple of 128
_TARGET_BLOCK_BYTES = 4 * 1024 * 1024   # ~4 MiB/block; x4 (in+out, double-buffered) = 16 MiB
_VMEM_LIMIT_BYTES = 32 * 1024 * 1024    # raises v5e's 16 MiB scoped default; fine on v6e/v7x
_FAST_PATH_BYTES = 1 << 20              # below this, plain jnp.where is strictly faster


def _pixel_threshold_kernel(x_ref, o_ref, *, threshold):
    x = x_ref[...]
    thr = jnp.asarray(threshold, x.dtype)
    zero = jnp.asarray(0, x.dtype)
    # x[x < t] = 0  (NaN < t is False -> NaN passes through, matching the
    # PyTorch boolean-mask assignment).
    o_ref[...] = jnp.where(x < thr, zero, x)


def _round_up(v: int, m: int) -> int:
    return ((v + m - 1) // m) * m


def _run_threshold_2d(x2d: jax.Array, threshold: float) -> jax.Array:
    """Run the Pallas kernel over a lane-dense (R, 512) view."""
    R, L = x2d.shape
    itemsize = jnp.dtype(x2d.dtype).itemsize
    # Packed-sublane multiple: 8 for f32, 16 for bf16, 32 for int8/fp8.
    sub = max(8, 32 // itemsize)

    if R <= sub:
        tile_r = R                                   # single full-extent block (always legal)
    else:
        budget_r = max(sub, _TARGET_BLOCK_BYTES // (L * itemsize))
        budget_r = max(sub, (budget_r // sub) * sub)
        # Cap so the grid has >= 2 steps: keeps both v7x TensorCores streaming.
        half_r = _round_up(pl.cdiv(R, 2), sub)
        tile_r = min(budget_r, half_r)
        tile_r = min(tile_r, R)

    grid = (pl.cdiv(R, tile_r),)
    kernel = functools.partial(_pixel_threshold_kernel, threshold=float(threshold))

    return pl.pallas_call(
        kernel,
        out_shape=jax.ShapeDtypeStruct((R, L), x2d.dtype),
        grid_spec=pltpu.PrefetchScalarGridSpec(
            num_scalar_prefetch=0,
            grid=grid,
            in_specs=[pl.BlockSpec((tile_r, L), lambda i: (i, 0))],
            out_specs=pl.BlockSpec((tile_r, L), lambda i: (i, 0)),
        ),
        input_output_aliases={0: 0},
        compiler_params=pltpu.CompilerParams(
            dimension_semantics=("parallel",),
            vmem_limit_bytes=_VMEM_LIMIT_BYTES,
        ),
    )(x2d)


@functools.partial(jax.jit, static_argnames=("threshold", "force_pallas"))
def pixel_threshold(x: jax.Array, threshold: float = 0.3, *, force_pallas: bool = False) -> jax.Array:
    """Zero out all elements of `x` below `threshold` (matches PixelThreshold.forward)."""
    orig_shape = x.shape
    dtype = x.dtype
    n = x.size
    if n == 0:
        return x

    itemsize = jnp.dtype(dtype).itemsize
    thr = jnp.asarray(threshold, dtype)
    zero = jnp.asarray(0, dtype)

    # Small-input fast path: kernel dispatch + DMA setup dominates for tiny tensors.
    if not force_pallas and n * itemsize < _FAST_PATH_BYTES:
        return jnp.where(x < thr, zero, x)

    L = _LANE_WIDTH
    flat = x.reshape(-1)
    n_bulk = (n // L) * L

    if n_bulk == n:
        # Aligned: single lane-dense kernel launch, no padding, no slicing.
        out2d = _run_threshold_2d(flat.reshape(n // L, L), threshold)
        return out2d.reshape(orig_shape)

    if n_bulk == 0:
        # Fewer than 512 elements total: not worth a kernel launch.
        return jnp.where(x < thr, zero, x)

    # Ragged: kernel over the aligned bulk, plain jnp.where on the short tail.
    bulk = flat[:n_bulk].reshape(n_bulk // L, L)
    tail = flat[n_bulk:]
    out_bulk = _run_threshold_2d(bulk, threshold).reshape(-1)
    out_tail = jnp.where(tail < thr, zero, tail)
    return jnp.concatenate([out_bulk, out_tail]).reshape(orig_shape)


def _ref(x, threshold):
    d = x.dtype
    return jnp.where(x < jnp.asarray(threshold, d), jnp.asarray(0, d), x)


if __name__ == "__main__":
    threshold = 0.3
    key = jax.random.PRNGKey(0)
    k1, k2, k3, k4 = jax.random.split(key, 4)

    # 1) Small NCHW input matching the module spec (2, 4, 16, 16); force the
    #    Pallas path so the kernel is exercised (size is 512-aligned -> no tail).
    x_small = jax.random.uniform(k1, (2, 4, 16, 16), dtype=jnp.float32)
    out_small = jax.block_until_ready(pixel_threshold(x_small, threshold, force_pallas=True))
    assert out_small.shape == x_small.shape and out_small.dtype == x_small.dtype
    assert jnp.array_equal(out_small, _ref(x_small, threshold))

    # 2) Ragged element count (2*3*17*19 = 1938) -> bulk-kernel + jnp.where tail path.
    x_ragged = jax.random.uniform(k2, (2, 3, 17, 19), dtype=jnp.float32)
    out_ragged = jax.block_until_ready(pixel_threshold(x_ragged, threshold, force_pallas=True))
    assert jnp.array_equal(out_ragged, _ref(x_ragged, threshold))

    # 3) Moderate activation (1 MiB f32) -> multi-step "parallel" grid (>= 2 blocks).
    x_mid = jax.random.uniform(k3, (4, 64, 32, 32), dtype=jnp.float32)
    out_mid = jax.block_until_ready(pixel_threshold(x_mid, threshold))
    assert jnp.array_equal(out_mid, _ref(x_mid, threshold))

    # 4) bf16 input -> exercises dtype-aware sublane rounding (multiple of 16).
    x_bf16 = jax.random.uniform(k4, (2, 8, 32, 32), dtype=jnp.float32).astype(jnp.bfloat16)
    out_bf16 = jax.block_until_ready(pixel_threshold(x_bf16, threshold, force_pallas=True))
    assert out_bf16.dtype == jnp.bfloat16
    assert jnp.array_equal(out_bf16, _ref(x_bf16, threshold))

    # 5) Fast path (no Pallas) on the tiny tensor still matches.
    out_fast = jax.block_until_ready(pixel_threshold(x_small, threshold))
    assert jnp.array_equal(out_fast, _ref(x_small, threshold))

    print("KERNEL_OK")
</pallas_src>

<mosaic_0001>
module attributes {stable_mosaic.version = 11 : i64} {
  func.func @_pixel_threshold_kernel(%arg0: i32, %arg1: memref<4x512xf32, #tpu.memory_space<vmem>>, %arg2: memref<4x512xf32, #tpu.memory_space<vmem>>) attributes {dimension_semantics = [#tpu.dimension_semantics<parallel>], iteration_bounds = array<i64: 1>, scalar_prefetch = 0 : i64, scratch_operands = 0 : i64, tpu.core_type = #tpu.core_type<tc>, window_params = [{transform_indices = @transform_0, window_bounds = array<i64: 4, 512>}, {transform_indices = @transform_1, window_bounds = array<i64: 4, 512>}]} {
    %c0 = arith.constant 0 : index
    %c0_0 = arith.constant 0 : index
    %0 = vector.load %arg1[%c0, %c0_0] : memref<4x512xf32, #tpu.memory_space<vmem>>, vector<4x512xf32>
    %cst = arith.constant 3.000000e-01 : f32
    %1 = vector.broadcast %cst : f32 to vector<4x512xf32>
    %2 = arith.cmpf olt, %0, %1 : vector<4x512xf32>
    %cst_1 = arith.constant 0.000000e+00 : f32
    %3 = vector.broadcast %cst_1 : f32 to vector<4x512xf32>
    %4 = arith.select %2, %3, %0 : vector<4x512xi1>, vector<4x512xf32>
    %c0_2 = arith.constant 0 : index
    %c0_3 = arith.constant 0 : index
    %5 = vector.load %arg2[%c0_2, %c0_3] : memref<4x512xf32, #tpu.memory_space<vmem>>, vector<4x512xf32>
    tpu.vector_store %arg2[%c0_2, %c0_3], %4 {strides = array<i32>} : memref<4x512xf32, #tpu.memory_space<vmem>>, vector<4x512xf32>,
    return
  }
  func.func @transform_0(%arg0: i32) -> (i32, i32) {
    %c0_i32 = arith.constant 0 : i32
    %c0_i32_0 = arith.constant 0 : i32
    return %arg0, %c0_i32 : i32, i32
  }
  func.func @transform_1(%arg0: i32) -> (i32, i32) {
    %c0_i32 = arith.constant 0 : i32
    %c0_i32_0 = arith.constant 0 : i32
    return %arg0, %c0_i32 : i32, i32
  }
}

</mosaic_0001>

<llo_original>
// kernel: pixel_threshold.1
$region0: #{pixel_threshold.1}
  #allocation0 [shape = 'u32[]', space=smem, size = 0x4, offset = 0x4, fixed_abs, tag = 'smem constant byte address 0x4 - core index']
  #allocation1 [shape = 'u32[144,128]{1,0:T(1,128)}', space=vmem, size = 0x12000, scoped, tag = 'internal scratch']
  %s0 = inlined_call_operand.vmem [shape: f32[4,512], index: 0, kind: input, shape index: {}, may-alias: {0,1}]
  %s1 = inlined_call_operand.vmem [shape: f32[4,512], index: 1, kind: output, shape index: {}, may-alias: {0,1}]
  %s2 = sld [smem:[#allocation0]]
  $region14: #{pixel_threshold.1} parent=0
    _
  %s4 = ssub.s32 1, %s2
  %s5 = scalar_select 0, %s4, %s2
  // Predicated region
  $region2: #{pixel_threshold.1} parent=0 // pred_check
    _
  $region3: #{pixel_threshold.1} parent=0 // pred_check_branch
    %7 = sbr.rel (0) target = $region5
  $region4: #{pixel_threshold.1} parent=0 // pred_region
    _
  $region5: #{pixel_threshold.1} parent=0 // pred_fallthru
    _
  %v8 = vld [vmem:[%s0] sm:$0xff]
  %v9 = vld [vmem:[%s0 + $0x8] sm:$0xff]
  %vm10 = vcmp.lt.f32.partialorder %v8, 0.3
  %vm11 = vcmp.lt.f32.partialorder %v9, 0.3
  %v12 = vsel %vm10, 0.0, %v8
  %v13 = vsel %vm11, 0.0, %v9
  %14 = vst [vmem:[%s1] sm:$0xff] %v12
  %15 = vst [vmem:[%s1 + $0x8] sm:$0xff] %v13
  // Predicated region
  $region6: #{pixel_threshold.1} parent=0 // pred_check
    _
  $region7: #{pixel_threshold.1} parent=0 // pred_check_branch
    %17 = sbr.rel (0) target = $region9
  $region8: #{pixel_threshold.1} parent=0 // pred_region
    _
  $region9: #{pixel_threshold.1} parent=0 // pred_fallthru
    _
  // Predicated region
  $region10: #{pixel_threshold.1} parent=0 // pred_check
    _
  $region11: #{pixel_threshold.1} parent=0 // pred_check_branch
    %19 = sbr.rel (0) target = $region13
  $region12: #{pixel_threshold.1} parent=0 // pred_region
    _
  $region13: #{pixel_threshold.1} parent=0 // pred_fallthru
    _

</llo_original>
